<compile_context>
chip_gen: v6e
topology: v6e:2x2x1
jax: 0.10.0
libtpu: 0.0.40
codegen_flags: <defaults>
</compile_context>

<pallas_src>
import jax
import jax.numpy as jnp
from jax.experimental import pallas as pl
from jax.experimental.pallas import tpu as pltpu

DP = 128  # lane-dense padded output feature width


def _round_up(x, m):
    return ((x + m - 1) // m) * m


# ---------------- stage 1: xw = (X * D_out^{-1/2}) @ W  (bf16, lane-dense) ---
def xw_kernel(feats_ref, dout_ref, w_ref, xw_ref):
    dout = jnp.maximum(dout_ref[...], 1.0)                      # clamp like DGL
    x = feats_ref[...] * jax.lax.rsqrt(dout)                    # src-norm
    xw = jnp.dot(x, w_ref[...], preferred_element_type=jnp.float32)
    xw_ref[...] = xw.astype(xw_ref.dtype)                       # -> bf16


# ---------------- stage 2: h = rsqrt(din) * (A @ XW) + b ---------------------
def agg_kernel(adj_ref, xw_ref, din_ref, b_ref, h_ref, acc_ref):
    k = pl.program_id(1)

    @pl.when(k == 0)
    def _():
        acc_ref[...] = jnp.zeros_like(acc_ref)

    # bf16 x bf16 -> f32 accumulate on the MXU
    acc_ref[...] += jnp.dot(adj_ref[...], xw_ref[...],
                            preferred_element_type=jnp.float32)

    @pl.when(k == pl.num_programs(1) - 1)
    def _():
        din = jnp.maximum(din_ref[...], 1.0)
        h_ref[...] = acc_ref[...] * jax.lax.rsqrt(din) + b_ref[...]


# ---------------- edge-score head (synthesized `self.out` Linear) ------------
def edge_head_kernel(ef_ref, wout_ref, bout_ref, es_ref):
    es_ref[...] = jnp.dot(ef_ref[...], wout_ref[...],
                          preferred_element_type=jnp.float32) + bout_ref[...]


def custom_graph_conv_layer(adj, feats, W, b, deg_in, deg_out,
                            edge_feats, W_out, b_out):
    N = adj.shape[0]
    D_in = feats.shape[1]
    D_out = W.shape[1]
    E, D_edge = edge_feats.shape
    O = W_out.shape[1]

    # ---- tile sizes: sublane/lane aligned, capped so double-buffered tiles
    #      fit v7x's 64 MiB VMEM (32 MiB default scoped limit) -----------------
    TM = min(512, _round_up(N, 16))    # dst-row tile (bf16 sublane pack = 16)
    TK = min(512, _round_up(N, 128))   # src-col tile (lane axis)
    NP_R = _round_up(N, TM)            # padded dst rows
    NP_C = _round_up(N, TK)            # padded src cols

    # ---- pad to tile-aligned / lane-dense shapes (zeros keep math exact) ----
    adj_p = jnp.zeros((NP_R, NP_C), jnp.float32).at[:N, :N].set(adj)
    adj_p = adj_p.astype(jnp.bfloat16)                    # integer counts: exact
    feats_p = jnp.zeros((NP_C, D_in), jnp.float32).at[:N, :].set(feats)
    dout_p = jnp.zeros((NP_C, 1), jnp.float32).at[:N, :].set(deg_out)
    din_p = jnp.zeros((NP_R, 1), jnp.float32).at[:N, :].set(deg_in)
    W_p = jnp.zeros((D_in, DP), jnp.float32).at[:, :D_out].set(W)
    b_p = jnp.zeros((1, DP), jnp.float32).at[:, :D_out].set(b)

    # ---- stage 1: small per-row-tile kernel, output bf16 [NP_C, 128] --------
    xw = pl.pallas_call(
        xw_kernel,
        out_shape=jax.ShapeDtypeStruct((NP_C, DP), jnp.bfloat16),
        grid=(NP_C // TK,),
        in_specs=[pl.BlockSpec((TK, D_in), lambda i: (i, 0)),
                  pl.BlockSpec((TK, 1), lambda i: (i, 0)),
                  pl.BlockSpec((D_in, DP), lambda i: (0, 0))],
        out_specs=pl.BlockSpec((TK, DP), lambda i: (i, 0)),
        compiler_params=pltpu.CompilerParams(
            dimension_semantics=("parallel",)),
    )(feats_p, dout_p, W_p)

    # ---- stage 2: tiled A @ XW with f32 accumulator --------------------------
    grid = (NP_R // TM, NP_C // TK)
    flops = int(2 * NP_R * NP_C * DP)
    bytes_accessed = int(NP_R * NP_C * 2 + NP_C * DP * 2 + NP_R * DP * 4
                         + NP_R * 4 + DP * 4)
    h_pad = pl.pallas_call(
        agg_kernel,
        out_shape=jax.ShapeDtypeStruct((NP_R, DP), jnp.float32),
        grid=grid,
        in_specs=[pl.BlockSpec((TM, TK), lambda i, k: (i, k)),   # adj tile
                  pl.BlockSpec((TK, DP), lambda i, k: (k, 0)),   # xw tile
                  pl.BlockSpec((TM, 1), lambda i, k: (i, 0)),    # deg_in
                  pl.BlockSpec((1, DP), lambda i, k: (0, 0))],   # bias
        out_specs=pl.BlockSpec((TM, DP), lambda i, k: (i, 0)),
        scratch_shapes=[pltpu.VMEM((TM, DP), jnp.float32)],
        compiler_params=pltpu.CompilerParams(
            dimension_semantics=("parallel", "arbitrary"),
            vmem_limit_bytes=32 * 1024 * 1024),
        cost_estimate=pl.CostEstimate(flops=flops,
                                      transcendentals=int(NP_R),
                                      bytes_accessed=bytes_accessed),
    )(adj_p, xw, din_p, b_p)
    h = h_pad[:N, :D_out]

    # ---- edge-score head: tiny full-block kernel, lane-dense output ---------
    Wout_p = jnp.zeros((D_edge, DP), jnp.float32).at[:, :O].set(W_out)
    bout_p = jnp.zeros((1, DP), jnp.float32).at[:, :O].set(b_out)
    vmem = pl.BlockSpec(memory_space=pltpu.MemorySpace.VMEM)
    es_pad = pl.pallas_call(
        edge_head_kernel,
        out_shape=jax.ShapeDtypeStruct((E, DP), jnp.float32),
        in_specs=[vmem, vmem, vmem],
        out_specs=vmem,
    )(edge_feats, Wout_p, bout_p)
    edge_scores = es_pad[:E, :O]

    return h, edge_scores


def xavier_uniform(key, fan_in, fan_out):
    limit = (6.0 / (fan_in + fan_out)) ** 0.5
    return jax.random.uniform(key, (fan_in, fan_out), jnp.float32, -limit, limit)


if __name__ == "__main__":
    # ---- small deterministic synthetic graph ---------------------------------
    N = 16          # nodes
    E = 32          # edges
    D_IN = 32       # input_dim
    D_OUT = 16      # output_dim
    D_EDGE = 8      # edge feature dim (for the synthesized `self.out` head)

    root = jax.random.PRNGKey(0)
    k_src, k_dst, k_x, k_ef, k_w, k_wo = jax.random.split(root, 6)

    src = jax.random.randint(k_src, (E,), 0, N)
    dst = jax.random.randint(k_dst, (E,), 0, N)

    # dense adjacency A[dst, src] (+= handles multi-edges like DGL does)
    adj = jnp.zeros((N, N), jnp.float32).at[dst, src].add(1.0)
    deg_in = adj.sum(axis=1, keepdims=True)          # [N, 1] in-degree per dst
    deg_out = adj.sum(axis=0, keepdims=True).T       # [N, 1] out-degree per src

    feats = jax.random.normal(k_x, (N, D_IN), jnp.float32)
    edge_feats = jax.random.normal(k_ef, (E, D_EDGE), jnp.float32)

    # GraphConv params (xavier weight, zero bias — matches DGL reset_parameters)
    W = xavier_uniform(k_w, D_IN, D_OUT)
    b = jnp.zeros((1, D_OUT), jnp.float32)

    # synthesized `self.out` Linear(D_EDGE -> D_OUT)
    W_out = xavier_uniform(k_wo, D_EDGE, D_OUT)
    b_out = jnp.zeros((1, D_OUT), jnp.float32)

    h, edge_scores = custom_graph_conv_layer(
        adj, feats, W, b, deg_in, deg_out, edge_feats, W_out, b_out)
    jax.block_until_ready((h, edge_scores))

    # ---- reference check in plain f32 JAX ------------------------------------
    x_ref = feats * jax.lax.rsqrt(jnp.maximum(deg_out, 1.0))
    h_ref = ((adj @ x_ref) * jax.lax.rsqrt(jnp.maximum(deg_in, 1.0))) @ W + b
    es_ref = edge_feats @ W_out + b_out
    # bf16 MXU operands in the aggregation path -> loosened tolerance on h
    assert jnp.allclose(h, h_ref, atol=5e-2, rtol=5e-2), \
        float(jnp.max(jnp.abs(h - h_ref)))
    assert jnp.allclose(edge_scores, es_ref, atol=1e-5), \
        float(jnp.max(jnp.abs(edge_scores - es_ref)))

    print("KERNEL_OK")
</pallas_src>

<mosaic_0001>
module attributes {stable_mosaic.version = 11 : i64} {
  func.func @xw_kernel(%arg0: i32, %arg1: memref<128x32xf32, #tpu.memory_space<vmem>>, %arg2: memref<128x1xf32, #tpu.memory_space<vmem>>, %arg3: memref<32x128xf32, #tpu.memory_space<vmem>>, %arg4: memref<128x128xbf16, #tpu.memory_space<vmem>>) attributes {dimension_semantics = [#tpu.dimension_semantics<parallel>], iteration_bounds = array<i64: 1>, scalar_prefetch = 0 : i64, scratch_operands = 0 : i64, tpu.core_type = #tpu.core_type<tc>, window_params = [{transform_indices = @transform_0, window_bounds = array<i64: 128, 32>}, {transform_indices = @transform_1, window_bounds = array<i64: 128, 1>}, {pipeline_mode = #tpu.pipeline_mode<synchronous>, transform_indices = @transform_2, window_bounds = array<i64: 32, 128>}, {transform_indices = @transform_3, window_bounds = array<i64: 128, 128>}]} {
    %c0 = arith.constant 0 : index
    %c0_0 = arith.constant 0 : index
    %0 = vector.load %arg2[%c0, %c0_0] : memref<128x1xf32, #tpu.memory_space<vmem>>, vector<128x1xf32>
    %cst = arith.constant 1.000000e+00 : f32
    %1 = vector.broadcast %cst : f32 to vector<128x1xf32>
    %2 = arith.maximumf %0, %1 : vector<128x1xf32>
    %c0_1 = arith.constant 0 : index
    %c0_2 = arith.constant 0 : index
    %3 = vector.load %arg1[%c0_1, %c0_2] : memref<128x32xf32, #tpu.memory_space<vmem>>, vector<128x32xf32>
    %4 = math.rsqrt %2 : vector<128x1xf32>
    %5 = vector.broadcast %4 : vector<128x1xf32> to vector<128x32xf32>
    %6 = arith.mulf %3, %5 : vector<128x32xf32>
    %c0_3 = arith.constant 0 : index
    %c0_4 = arith.constant 0 : index
    %7 = vector.load %arg3[%c0_3, %c0_4] : memref<32x128xf32, #tpu.memory_space<vmem>>, vector<32x128xf32>
    %cst_5 = arith.constant dense<0.000000e+00> : vector<128x128xf32>
    %8 = tpu.matmul %6, %7, %cst_5 {dimension_numbers = #tpu.dot_dimension_numbers<[1], [0], [0], [1], [0, 0, 1, 1], [], []>} : vector<128x32xf32>, vector<32x128xf32>, vector<128x128xf32> -> vector<128x128xf32>
    %9 = arith.truncf %8 : vector<128x128xf32> to vector<128x128xbf16>
    %c0_6 = arith.constant 0 : index
    %c0_7 = arith.constant 0 : index
    %10 = vector.load %arg4[%c0_6, %c0_7] : memref<128x128xbf16, #tpu.memory_space<vmem>>, vector<128x128xbf16>
    tpu.vector_store %arg4[%c0_6, %c0_7], %9 {strides = array<i32>} : memref<128x128xbf16, #tpu.memory_space<vmem>>, vector<128x128xbf16>,
    return
  }
  func.func @transform_0(%arg0: i32) -> (i32, i32) {
    %c0_i32 = arith.constant 0 : i32
    %c0_i32_0 = arith.constant 0 : i32
    return %arg0, %c0_i32 : i32, i32
  }
  func.func @transform_1(%arg0: i32) -> (i32, i32) {
    %c0_i32 = arith.constant 0 : i32
    %c0_i32_0 = arith.constant 0 : i32
    return %arg0, %c0_i32 : i32, i32
  }
  func.func @transform_2(%arg0: i32) -> (i32, i32) {
    %c0_i32 = arith.constant 0 : i32
    %c0_i32_0 = arith.constant 0 : i32
    %c0_i32_1 = arith.constant 0 : i32
    return %c0_i32, %c0_i32_0 : i32, i32
  }
  func.func @transform_3(%arg0: i32) -> (i32, i32) {
    %c0_i32 = arith.constant 0 : i32
    %c0_i32_0 = arith.constant 0 : i32
    return %arg0, %c0_i32 : i32, i32
  }
}

</mosaic_0001>

<llo_original>
// kernel: tpu_custom_call.1
$region0: #{tpu_custom_call.1}
  #allocation0 [shape = 'u32[]', space=smem, size = 0x4, offset = 0x4, fixed_abs, tag = 'smem constant byte address 0x4 - core index']
  #allocation1 [shape = 'u32[144,128]{1,0:T(1,128)}', space=vmem, size = 0x12000, scoped, tag = 'internal scratch']
  %s0 = inlined_call_operand.vmem [shape: f32[128,32], index: 0, kind: input, shape index: {}]
  %s1 = inlined_call_operand.vmem [shape: f32[128,1], index: 1, kind: input, shape index: {}]
  %s2 = inlined_call_operand.vmem [shape: f32[32,128], index: 2, kind: input, shape index: {}]
  %s3 = inlined_call_operand.hbm [shape: bf16[128,128], index: 3, kind: output, shape index: {}]
  %s4 = sld [smem:[#allocation0]]
  $region22: #{tpu_custom_call.1} parent=0
    _
  %s6 = ssub.s32 1, %s4
  %s7 = scalar_select 0, %s6, %s4
  $region1: #{tpu_custom_call.1} parent=0
    #allocation2 [shape = 'u8[32768]{0}', space=vmem, size = 0x8000, scoped, tag = 'output window, operand 0, single buffered']
    #allocation3 [shape = 's32[1]{0}', space=sflag, size = 0x4, scoped, tag = 'scoped memory for tpu_custom_call.1']
    %8 = vsyncpa [#allocation3], 0
    // Predicated region
    $region2: #{tpu_custom_call.1} parent=1 // pred_check
      _
    $region3: #{tpu_custom_call.1} parent=1 // pred_check_branch
      %10 = sbr.rel (0) target = $region5
    $region4: #{tpu_custom_call.1} parent=1 // pred_region
      _
    $region5: #{tpu_custom_call.1} parent=1 // pred_fallthru
      _
    // Predicated region
    $region6: #{tpu_custom_call.1} parent=1 // pred_check
      _
    $region7: #{tpu_custom_call.1} parent=1 // pred_check_branch
      %12 = sbr.rel (0) target = $region9
    $region8: #{tpu_custom_call.1} parent=1 // pred_region
      _
    $region9: #{tpu_custom_call.1} parent=1 // pred_fallthru
      _
    // Predicated region
    $region10: #{tpu_custom_call.1} parent=1 // pred_check
      _
    $region11: #{tpu_custom_call.1} parent=1 // pred_check_branch
      %14 = sbr.rel (0) target = $region13
    $region12: #{tpu_custom_call.1} parent=1 // pred_region
      _
    $region13: #{tpu_custom_call.1} parent=1 // pred_fallthru
      _
    %v15 = vld [vmem:[%s1] sm:$0xff]
    %v16 = vld [vmem:[%s1 + $0x8] sm:$0xff]
    %v17 = vld [vmem:[%s1 + $0x10] sm:$0xff]
    %v18 = vld [vmem:[%s1 + $0x18] sm:$0xff]
    %v19 = vld [vmem:[%s1 + $0x20] sm:$0xff]
    %v20 = vld [vmem:[%s1 + $0x28] sm:$0xff]
    %v21 = vld [vmem:[%s1 + $0x30] sm:$0xff]
    %v22 = vld [vmem:[%s1 + $0x38] sm:$0xff]
    %v23 = vld [vmem:[%s1 + $0x40] sm:$0xff]
    %v24 = vld [vmem:[%s1 + $0x48] sm:$0xff]
    %v25 = vld [vmem:[%s1 + $0x50] sm:$0xff]
    %v26 = vld [vmem:[%s1 + $0x58] sm:$0xff]
    %v27 = vld [vmem:[%s1 + $0x60] sm:$0xff]
    %v28 = vld [vmem:[%s1 + $0x68] sm:$0xff]
    %v29 = vld [vmem:[%s1 + $0x70] sm:$0xff]
    %v30 = vld [vmem:[%s1 + $0x78] sm:$0xff]
    %v31 = vmax.f32 %v15, 1.0
    %v32 = vmax.f32 %v16, 1.0
    %v33 = vmax.f32 %v17, 1.0
    %v34 = vmax.f32 %v18, 1.0
    %v35 = vmax.f32 %v19, 1.0
    %v36 = vmax.f32 %v20, 1.0
    %v37 = vmax.f32 %v21, 1.0
    %v38 = vmax.f32 %v22, 1.0
    %v39 = vmax.f32 %v23, 1.0
    %v40 = vmax.f32 %v24, 1.0
    %v41 = vmax.f32 %v25, 1.0
    %v42 = vmax.f32 %v26, 1.0
    %v43 = vmax.f32 %v27, 1.0
    %v44 = vmax.f32 %v28, 1.0
    %v45 = vmax.f32 %v29, 1.0
    %v46 = vmax.f32 %v30, 1.0
    %v47 = vld [vmem:[%s0] sm:$0xff]
    %v48 = vld [vmem:[%s0 + $0x8] sm:$0xff]
    %v49 = vld [vmem:[%s0 + $0x10] sm:$0xff]
    %v50 = vld [vmem:[%s0 + $0x18] sm:$0xff]
    %v51 = vld [vmem:[%s0 + $0x20] sm:$0xff]
    %v52 = vld [vmem:[%s0 + $0x28] sm:$0xff]
    %v53 = vld [vmem:[%s0 + $0x30] sm:$0xff]
    %v54 = vld [vmem:[%s0 + $0x38] sm:$0xff]
    %v55 = vld [vmem:[%s0 + $0x40] sm:$0xff]
    %v56 = vld [vmem:[%s0 + $0x48] sm:$0xff]
    %v57 = vld [vmem:[%s0 + $0x50] sm:$0xff]
    %v58 = vld [vmem:[%s0 + $0x58] sm:$0xff]
    %v59 = vld [vmem:[%s0 + $0x60] sm:$0xff]
    %v60 = vld [vmem:[%s0 + $0x68] sm:$0xff]
    %v61 = vld [vmem:[%s0 + $0x70] sm:$0xff]
    %v62 = vld [vmem:[%s0 + $0x78] sm:$0xff]
    %v63 = vrsqrt.pop %v31
    %v64 = vrsqrt.pop %v32
    %v65 = vrsqrt.pop %v33
    %v66 = vrsqrt.pop %v34
    %v67 = vrsqrt.pop %v35
    %v68 = vrsqrt.pop %v36
    %v69 = vrsqrt.pop %v37
    %v70 = vrsqrt.pop %v38
    %v71 = vrsqrt.pop %v39
    %v72 = vrsqrt.pop %v40
    %v73 = vrsqrt.pop %v41
    %v74 = vrsqrt.pop %v42
    %v75 = vrsqrt.pop %v43
    %v76 = vrsqrt.pop %v44
    %v77 = vrsqrt.pop %v45
    %v78 = vrsqrt.pop %v46
    %80 = vset.pattern.permute.xlu0 0
    %81 = vperm.xlu0 %80, %v63
    %v82 = vpop.permute.xlu0 %81
    %85 = vset.pattern.permute.xlu0 0
    %86 = vperm.xlu0 %85, %v64
    %v87 = vpop.permute.xlu0 %86
    %90 = vset.pattern.permute.xlu0 0
    %91 = vperm.xlu0 %90, %v65
    %v92 = vpop.permute.xlu0 %91
    %95 = vset.pattern.permute.xlu0 0
    %96 = vperm.xlu0 %95, %v66
    %v97 = vpop.permute.xlu0 %96
    %100 = vset.pattern.permute.xlu0 0
    %101 = vperm.xlu0 %100, %v67
    %v102 = vpop.permute.xlu0 %101
    %105 = vset.pattern.permute.xlu0 0
    %106 = vperm.xlu0 %105, %v68
    %v107 = vpop.permute.xlu0 %106
    %110 = vset.pattern.permute.xlu0 0
    %111 = vperm.xlu0 %110, %v69
    %v112 = vpop.permute.xlu0 %111
    %115 = vset.pattern.permute.xlu0 0
    %116 = vperm.xlu0 %115, %v70
    %v117 = vpop.permute.xlu0 %116
    %120 = vset.pattern.permute.xlu0 0
    %121 = vperm.xlu0 %120, %v71
    %v122 = vpop.permute.xlu0 %121
    %125 = vset.pattern.permute.xlu0 0
    %126 = vperm.xlu0 %125, %v72
    %v127 = vpop.permute.xlu0 %126
    %130 = vset.pattern.permute.xlu0 0
    %131 = vperm.xlu0 %130, %v73
    %v132 = vpop.permute.xlu0 %131
    %135 = vset.pattern.permute.xlu0 0
    %136 = vperm.xlu0 %135, %v74
    %v137 = vpop.permute.xlu0 %136
    %140 = vset.pattern.permute.xlu0 0
    %141 = vperm.xlu0 %140, %v75
    %v142 = vpop.permute.xlu0 %141
    %145 = vset.pattern.permute.xlu0 0
    %146 = vperm.xlu0 %145, %v76
    %v147 = vpop.permute.xlu0 %146
    %150 = vset.pattern.permute.xlu0 0
    %151 = vperm.xlu0 %150, %v77
    %v152 = vpop.permute.xlu0 %151
    %155 = vset.pattern.permute.xlu0 0
    %156 = vperm.xlu0 %155, %v78
    %v157 = vpop.permute.xlu0 %156
    %v159 = vmul.f32 %v47, %v82
    %v160 = vmul.f32 %v48, %v87
    %v161 = vmul.f32 %v49, %v92
    %v162 = vmul.f32 %v50, %v97
    %v163 = vmul.f32 %v51, %v102
    %v164 = vmul.f32 %v52, %v107
    %v165 = vmul.f32 %v53, %v112
    %v166 = vmul.f32 %v54, %v117
    %v167 = vmul.f32 %v55, %v122
    %v168 = vmul.f32 %v56, %v127
    %v169 = vmul.f32 %v57, %v132
    %v170 = vmul.f32 %v58, %v137
    %v171 = vmul.f32 %v59, %v142
    %v172 = vmul.f32 %v60, %v147
    %v173 = vmul.f32 %v61, %v152
    %v174 = vmul.f32 %v62, %v157
    %v175 = vld [vmem:[%s2] sm:$0xff]
    %v176 = vld [vmem:[%s2 + $0x8] sm:$0xff]
    %v177 = vld [vmem:[%s2 + $0x10] sm:$0xff]
    %v178 = vld [vmem:[%s2 + $0x18] sm:$0xff]
    %vm179 = vcmask 261120
    %v181 = vsel %vm179, %v159, 0
    %v184 = vsel %vm179, %v160, 0
    %v187 = vsel %vm179, %v161, 0
    %v190 = vsel %vm179, %v162, 0
    %v193 = vsel %vm179, %v163, 0
    %v196 = vsel %vm179, %v164, 0
    %v199 = vsel %vm179, %v165, 0
    %v202 = vsel %vm179, %v166, 0
    %v205 = vsel %vm179, %v167, 0
    %v208 = vsel %vm179, %v168, 0
    %v211 = vsel %vm179, %v169, 0
    %v214 = vsel %vm179, %v170, 0
    %v217 = vsel %vm179, %v171, 0
    %v220 = vsel %vm179, %v172, 0
    %v223 = vsel %vm179, %v173, 0
    %v226 = vsel %vm179, %v174, 0
    %228 = vmatprep.subr.mxu0 0.0
    %229 = vmatpush1.msra.mxu0 0.0
    %230 = vmatprep.subr.mxu0 0.0
    %231 = vmatpush1.msra.mxu0 0.0
    %232 = vmatprep.subr.mxu0 0.0
    %233 = vmatpush1.msra.mxu0 0.0
    %234 = vmatprep.subr.mxu0 0.0
    %235 = vmatpush1.msra.mxu0 0.0
    %236 = vmatprep.subr.mxu0 0.0
    %237 = vmatpush1.msra.mxu0 0.0
    %238 = vmatprep.subr.mxu0 0.0
    %239 = vmatpush1.msra.mxu0 0.0
    %240 = vmatprep.subr.mxu0 0.0
    %241 = vmatpush1.msra.mxu0 0.0
    %242 = vmatprep.subr.mxu0 0.0
    %243 = vmatpush1.msra.mxu0 0.0
    %244 = vmatprep.subr.mxu0 0.0
    %245 = vmatpush1.msra.mxu0 0.0
    %246 = vmatprep.subr.mxu0 0.0
    %247 = vmatpush1.msra.mxu0 0.0
    %248 = vmatprep.subr.mxu0 0.0
    %249 = vmatpush1.msra.mxu0 0.0
    %250 = vmatprep.subr.mxu0 0.0
    %251 = vmatpush1.msra.mxu0 0.0
    %252 = vmatprep.subr.mxu0 0.0
    %253 = vmatpush1.msra.mxu0 %v178
    %254 = vmatprep.subr.mxu0 0.0
    %255 = vmatpush1.msra.mxu0 %v177
    %256 = vmatprep.subr.mxu0 0.0
    %257 = vmatpush1.msra.mxu0 %v176
    %258 = vmatprep.subr.mxu0 0.0
    %259 = vmatpush1.msra.mxu0 %v175
    %260 = vmatprep.subr.mxu0 0.0
    %261 = vmatpush2.msra.mxu0 0.0
    %262 = vmatprep.subr.mxu0 0.0
    %263 = vmatpush2.msra.mxu0 0.0
    %264 = vmatprep.subr.mxu0 0.0
    %265 = vmatpush2.msra.mxu0 0.0
    %266 = vmatprep.subr.mxu0 0.0
    %267 = vmatpush2.msra.mxu0 0.0
    %268 = vmatprep.subr.mxu0 0.0
    %269 = vmatpush2.msra.mxu0 0.0
    %270 = vmatprep.subr.mxu0 0.0
    %271 = vmatpush2.msra.mxu0 0.0
    %272 = vmatprep.subr.mxu0 0.0
    %273 = vmatpush2.msra.mxu0 0.0
    %274 = vmatprep.subr.mxu0 0.0
    %275 = vmatpush2.msra.mxu0 0.0
    %276 = vmatprep.subr.mxu0 0.0
    %277 = vmatpush2.msra.mxu0 0.0
    %278 = vmatprep.subr.mxu0 0.0
    %279 = vmatpush2.msra.mxu0 0.0
    %280 = vmatprep.subr.mxu0 0.0
    %281 = vmatpush2.msra.mxu0 0.0
    %282 = vmatprep.subr.mxu0 0.0
    %283 = vmatpush2.msra.mxu0 0.0
    %284 = vmatprep.subr.mxu0 0.0
    %285 = vmatpush2.msra.mxu0 0.0
    %286 = vmatprep.subr.mxu0 0.0
    %287 = vmatpush2.msra.mxu0 0.0
    %288 = vmatprep.subr.mxu0 0.0
    %289 = vmatpush2.msra.mxu0 0.0
    %290 = vmatprep.subr.mxu0 0.0
    %291 = vmatpush2.msra.mxu0 0.0
    %292 = vmatprep.mubr.f32.mxu0 0.0
    %293 = vmatmul.mubr.f32.gmra.mxu0 %v181
    %v294 = vpop.f32.mrf.mxu0
    %v295 = vadd.f32 0.0, %v294
    %v296 = vpop.f32.mrf.mxu0
    %297 = vmatprep.mubr.f32.mxu0 0.0
    %298 = vmatmul.mubr.f32.gmra.mxu0 %v184
    %v299 = vpop.f32.mrf.mxu0
    %v300 = vadd.f32 0.0, %v299
    %v301 = vpop.f32.mrf.mxu0
    %302 = vmatprep.mubr.f32.mxu0 0.0
    %303 = vmatmul.mubr.f32.gmra.mxu0 %v187
    %v304 = vpop.f32.mrf.mxu0
    %v305 = vadd.f32 0.0, %v304
    %v306 = vpop.f32.mrf.mxu0
    %307 = vmatprep.mubr.f32.mxu0 0.0
    %308 = vmatmul.mubr.f32.gmra.mxu0 %v190
    %v309 = vpop.f32.mrf.mxu0
    %v310 = vadd.f32 0.0, %v309
    %v311 = vpop.f32.mrf.mxu0
    %312 = vmatprep.mubr.f32.mxu0 0.0
    %313 = vmatmul.mubr.f32.gmra.mxu0 %v193
    %v314 = vpop.f32.mrf.mxu0
    %v315 = vadd.f32 0.0, %v314
    %v316 = vpop.f32.mrf.mxu0
    %317 = vmatprep.mubr.f32.mxu0 0.0
    %318 = vmatmul.mubr.f32.gmra.mxu0 %v196
    %v319 = vpop.f32.mrf.mxu0
    %v320 = vadd.f32 0.0, %v319
    %v321 = vpop.f32.mrf.mxu0
    %322 = vmatprep.mubr.f32.mxu0 0.0
    %323 = vmatmul.mubr.f32.gmra.mxu0 %v199
    %v324 = vpop.f32.mrf.mxu0
    %v325 = vadd.f32 0.0, %v324
    %v326 = vpop.f32.mrf.mxu0
    %327 = vmatprep.mubr.f32.mxu0 0.0
    %328 = vmatmul.mubr.f32.gmra.mxu0 %v202
    %v329 = vpop.f32.mrf.mxu0
    %v330 = vadd.f32 0.0, %v329
    %v331 = vpop.f32.mrf.mxu0
    %332 = vmatprep.mubr.f32.mxu0 0.0
    %333 = vmatmul.mubr.f32.gmra.mxu0 %v205
    %v334 = vpop.f32.mrf.mxu0
    %v335 = vadd.f32 0.0, %v334
    %v336 = vpop.f32.mrf.mxu0
    %337 = vmatprep.mubr.f32.mxu0 0.0
    %338 = vmatmul.mubr.f32.gmra.mxu0 %v208
    %v339 = vpop.f32.mrf.mxu0
    %v340 = vadd.f32 0.0, %v339
    %v341 = vpop.f32.mrf.mxu0
    %342 = vmatprep.mubr.f32.mxu0 0.0
    %343 = vmatmul.mubr.f32.gmra.mxu0 %v211
    %v344 = vpop.f32.mrf.mxu0
    %v345 = vadd.f32 0.0, %v344
    %v346 = vpop.f32.mrf.mxu0
    %347 = vmatprep.mubr.f32.mxu0 0.0
    %348 = vmatmul.mubr.f32.gmra.mxu0 %v214
    %v349 = vpop.f32.mrf.mxu0
    %v350 = vadd.f32 0.0, %v349
    %v351 = vpop.f32.mrf.mxu0
    %352 = vmatprep.mubr.f32.mxu0 0.0
    %353 = vmatmul.mubr.f32.gmra.mxu0 %v217
    %v354 = vpop.f32.mrf.mxu0
    %v355 = vadd.f32 0.0, %v354
    %v356 = vpop.f32.mrf.mxu0
    %357 = vmatprep.mubr.f32.mxu0 0.0
    %358 = vmatmul.mubr.f32.gmra.mxu0 %v220
    %v359 = vpop.f32.mrf.mxu0
    %v360 = vadd.f32 0.0, %v359
    %v361 = vpop.f32.mrf.mxu0
    %362 = vmatprep.mubr.f32.mxu0 0.0
    %363 = vmatmul.mubr.f32.gmra.mxu0 %v223
    %v364 = vpop.f32.mrf.mxu0
    %v365 = vadd.f32 0.0, %v364
    %v366 = vpop.f32.mrf.mxu0
    %367 = vmatprep.mubr.f32.mxu0 0.0
    %368 = vmatmul.mubr.f32.gmra.mxu0 %v226
    %v369 = vpop.f32.mrf.mxu0
    %v370 = vadd.f32 0.0, %v369
    %v371 = vpop.f32.mrf.mxu0
    %372 = vdwg.mxu0
    %v373 = vpack.c.bf16 %v300, %v295
    %v374 = vpack.c.bf16 %v310, %v305
    %v375 = vpack.c.bf16 %v320, %v315
    %v376 = vpack.c.bf16 %v330, %v325
    %v377 = vpack.c.bf16 %v340, %v335
    %v378 = vpack.c.bf16 %v350, %v345
    %v379 = vpack.c.bf16 %v360, %v355
    %v380 = vpack.c.bf16 %v370, %v365
    %v389 = vunpack.c.l.b16 %v373
    %v390 = vunpack.c.h.b16 %v373
    %v391 = vunpack.c.l.b16 %v374
    %v392 = vunpack.c.h.b16 %v374
    %v393 = vunpack.c.l.b16 %v375
    %v394 = vunpack.c.h.b16 %v375
    %v395 = vunpack.c.l.b16 %v376
    %v396 = vunpack.c.h.b16 %v376
    %v397 = vunpack.c.l.b16 %v377
    %v398 = vunpack.c.h.b16 %v377
    %v399 = vunpack.c.l.b16 %v378
    %v400 = vunpack.c.h.b16 %v378
    %v401 = vunpack.c.l.b16 %v379
    %v402 = vunpack.c.h.b16 %v379
    %v403 = vunpack.c.l.b16 %v380
    %v404 = vunpack.c.h.b16 %v380
    %v405 = vpack.c.b16 %v389, %v389
    %v406 = vpack.c.b16 %v390, %v390
    %v407 = vpack.c.b16 %v391, %v391
    %v408 = vpack.c.b16 %v392, %v392
    %v409 = vpack.c.b16 %v393, %v393
    %v410 = vpack.c.b16 %v394, %v394
    %v411 = vpack.c.b16 %v395, %v395
    %v412 = vpack.c.b16 %v396, %v396
    %v413 = vpack.c.b16 %v397, %v397
    %v414 = vpack.c.b16 %v398, %v398
    %v415 = vpack.c.b16 %v399, %v399
    %v416 = vpack.c.b16 %v400, %v400
    %v417 = vpack.c.b16 %v401, %v401
    %v418 = vpack.c.b16 %v402, %v402
    %v419 = vpack.c.b16 %v403, %v403
    %v420 = vpack.c.b16 %v404, %v404
    %437 = vst [vmem:[#allocation2] sm:$0xf] %v405
    %438 = vst [vmem:[#allocation2 + $0x4] sm:$0xf] %v406
    %439 = vst [vmem:[#allocation2 + $0x8] sm:$0xf] %v407
    %440 = vst [vmem:[#allocation2 + $0xc] sm:$0xf] %v408
    %441 = vst [vmem:[#allocation2 + $0x10] sm:$0xf] %v409
    %442 = vst [vmem:[#allocation2 + $0x14] sm:$0xf] %v410
    %443 = vst [vmem:[#allocation2 + $0x18] sm:$0xf] %v411
    %444 = vst [vmem:[#allocation2 + $0x1c] sm:$0xf] %v412
    %445 = vst [vmem:[#allocation2 + $0x20] sm:$0xf] %v413
    %446 = vst [vmem:[#allocation2 + $0x24] sm:$0xf] %v414
    %447 = vst [vmem:[#allocation2 + $0x28] sm:$0xf] %v415
    %448 = vst [vmem:[#allocation2 + $0x2c] sm:$0xf] %v416
    %449 = vst [vmem:[#allocation2 + $0x30] sm:$0xf] %v417
    %450 = vst [vmem:[#allocation2 + $0x34] sm:$0xf] %v418
    %451 = vst [vmem:[#allocation2 + $0x38] sm:$0xf] %v419
    %452 = vst [vmem:[#allocation2 + $0x3c] sm:$0xf] %v420
    // Predicated region
    $region14: #{tpu_custom_call.1} parent=1 // pred_check
      _
    $region15: #{tpu_custom_call.1} parent=1 // pred_check_branch
      %454 = sbr.rel (0) target = $region17
    $region16: #{tpu_custom_call.1} parent=1 // pred_region
      %s456 = ssub.s32 1024, 1024
      %457 = vsyncadd [#allocation3], %s456
      %s458 = sshll.u32 [#allocation2], 4
      %s459 = int_to_ptr.vmem [resolvable:$true] %s458
      %464 = dma.vmem_to_hbm [thread:$0]  %s459, 1024, %s3, [#allocation3], 64, 64, 4
    $region17: #{tpu_custom_call.1} parent=1 // pred_fallthru
      _
    // Predicated region
    $region18: #{tpu_custom_call.1} parent=1 // pred_check
      _
    $region19: #{tpu_custom_call.1} parent=1 // pred_check_branch
      %466 = sbr.rel (0) target = $region21
    $region20: #{tpu_custom_call.1} parent=1 // pred_region
      %467 = dma.done [#allocation3], 1024
    $region21: #{tpu_custom_call.1} parent=1 // pred_fallthru
      _
    %468 = vsyncpa [#allocation3], 1

</llo_original>
